<compile_context>
chip_gen: v7x
topology: tpu7x:2x2x1
jax: 0.10.0
libtpu: 0.0.40
codegen_flags: <defaults>
</compile_context>

<pallas_src>
import jax
import jax.numpy as jnp
from jax import lax
from jax.experimental import pallas as pl
from jax.experimental.pallas import tpu as pltpu


_VPU_UNROLL_MAX_D = 8  # use the unrolled VPU path for small contraction dims


def _round_up(v, m):
    return ((v + m - 1) // m) * m


def _choose_tile(n, max_tile, align):
    """Pick a tile size (multiple of `align`, <= max_tile) minimizing padded output."""
    n_pad = _round_up(n, align)
    if n_pad <= max_tile:
        return n_pad
    best_key, best_t = None, align
    for t in range(align, max_tile + 1, align):
        waste = _round_up(n_pad, t) - n_pad
        key = (waste, -t)  # least padding first, then biggest tile
        if best_key is None or key < best_key:
            best_key, best_t = key, t
    return best_t


def _pairwise_dist_kernel(x_ref, yt_ref, p_ref):
    # x_ref: (TM, D), yt_ref: (D, TN), p_ref: (TM, TN) for one (b, i, j) grid point.
    x = x_ref[...].astype(jnp.float32)    # (TM, D)
    yt = yt_ref[...].astype(jnp.float32)  # (D, TN)
    d = x.shape[1]

    if d <= _VPU_UNROLL_MAX_D:
        # Unrolled VPU path: no MXU, no XLU reduces. rx/ry recomputed from the
        # resident tiles (negligible vs the (TM,TN) output work).
        x0 = x[:, 0:1]          # (TM, 1)
        y0 = yt[0:1, :]         # (1, TN)
        rx = x0 * x0            # (TM, 1)
        ry = y0 * y0            # (1, TN)
        zz = x0 * y0            # (TM, TN)
        for k in range(1, d):
            xk = x[:, k:k + 1]
            yk = yt[k:k + 1, :]
            rx = rx + xk * xk
            ry = ry + yk * yk
            zz = zz + xk * yk
        p = rx + ry - 2.0 * zz
    else:
        # Large-dim fallback: lane-dense (M,K)x(K,N) MXU contraction, f32 accumulate.
        rx = jnp.sum(x * x, axis=1, keepdims=True)     # (TM, 1)
        ry = jnp.sum(yt * yt, axis=0, keepdims=True)   # (1, TN)
        zz = lax.dot_general(
            x, yt,
            dimension_numbers=(((1,), (0,)), ((), ())),
            preferred_element_type=jnp.float32,
        )
        p = rx + ry - 2.0 * zz

    p_ref[...] = p.astype(p_ref.dtype)


def batch_pairwise_dist(x, y, *, tm=1024, tn=2048, vmem_limit_bytes=48 * 1024 * 1024):
    """Pallas TPU implementation of _Distance.batch_pairwise_dist.

    Defaults (tm=1024, tn=2048, 48 MiB scoped VMEM) are safe on v5e/v6e/v7x.
    On v5e/v6e (128 MiB physical VMEM) tm=tn=2048 with ~64-72 MiB limit squeezes a
    few more percent; do NOT port that config to v7x (64 MiB VMEM per TC).
    """
    bs, nx, d = x.shape
    bs_y, ny, d_y = y.shape
    assert bs == bs_y and d == d_y

    out_dtype = x.dtype
    itemsize = jnp.dtype(out_dtype).itemsize
    sublanes = max(8, 32 // itemsize)   # native packed sublanes: 8 f32, 16 bf16, 32 i8

    tm = _choose_tile(nx, tm, sublanes)
    tn = _choose_tile(ny, tn, 128)

    nx_p = _round_up(nx, tm)
    ny_p = _round_up(ny, tn)

    # Pad ragged point counts (keeps output stores lane/sublane-dense & unmasked).
    if nx_p != nx:
        x = jnp.pad(x, ((0, 0), (0, nx_p - nx), (0, 0)))
    # Pre-transpose y -> (bs, d, ny): lane-dense rows for both the DMA and the kernel.
    y_t = jnp.swapaxes(y, 1, 2)
    if ny_p != ny:
        y_t = jnp.pad(y_t, ((0, 0), (0, 0), (0, ny_p - ny)))

    grid = (bs, nx_p // tm, ny_p // tn)

    cost = pl.CostEstimate(
        flops=2 * bs * nx_p * ny_p * d + 4 * bs * nx_p * ny_p,
        transcendentals=0,
        bytes_accessed=(x.size * x.dtype.itemsize
                        + y_t.size * y_t.dtype.itemsize
                        + bs * nx_p * ny_p * itemsize),
    )

    p = pl.pallas_call(
        _pairwise_dist_kernel,
        out_shape=jax.ShapeDtypeStruct((bs, nx_p, ny_p), out_dtype),
        grid_spec=pltpu.PrefetchScalarGridSpec(
            num_scalar_prefetch=0,
            grid=grid,
            in_specs=[
                pl.BlockSpec((None, tm, d), lambda b, i, j: (b, i, 0)),
                pl.BlockSpec((None, d, tn), lambda b, i, j: (b, 0, j)),
            ],
            out_specs=pl.BlockSpec((None, tm, tn), lambda b, i, j: (b, i, j)),
        ),
        compiler_params=pltpu.CompilerParams(
            # No reduction axis -> everything independent -> all parallel
            # (lets v7x's two TensorCores share the (bs, i, j) grid).
            dimension_semantics=("parallel", "parallel", "parallel"),
            vmem_limit_bytes=vmem_limit_bytes,
        ),
        cost_estimate=cost,
    )(x, y_t)

    if nx_p != nx or ny_p != ny:
        p = p[:, :nx, :ny]
    return p


def batch_pairwise_dist_ref(x, y):
    """Pure-JAX reference mirroring the PyTorch math."""
    xx = jnp.einsum("bid,bjd->bij", x, x)
    yy = jnp.einsum("bid,bjd->bij", y, y)
    zz = jnp.einsum("bid,bjd->bij", x, y)
    rx = jnp.diagonal(xx, axis1=1, axis2=2)[:, :, None]   # (bs, Nx, 1)
    ry = jnp.diagonal(yy, axis1=1, axis2=2)[:, None, :]   # (bs, 1, Ny)
    return rx + ry - 2.0 * zz


if __name__ == "__main__":
    key = jax.random.PRNGKey(0)
    kx, ky = jax.random.split(key)

    bs, nx, ny, d = 2, 128, 128, 3          # point-cloud style: 3-D points
    x = jax.random.normal(kx, (bs, nx, d), dtype=jnp.float32)
    y = jax.random.normal(ky, (bs, ny, d), dtype=jnp.float32)

    p = jax.block_until_ready(batch_pairwise_dist(x, y))
    p_ref = batch_pairwise_dist_ref(x, y)
    assert p.shape == (bs, nx, ny)
    assert p.dtype == x.dtype
    assert jnp.allclose(p, p_ref, atol=1e-4, rtol=1e-4)

    # Ragged shapes exercise the padding / tile-selection path.
    nx2, ny2 = 200, 96
    x2 = jax.random.normal(kx, (bs, nx2, d), dtype=jnp.float32)
    y2 = jax.random.normal(ky, (bs, ny2, d), dtype=jnp.float32)
    p2 = jax.block_until_ready(batch_pairwise_dist(x2, y2))
    p2_ref = batch_pairwise_dist_ref(x2, y2)
    assert p2.shape == (bs, nx2, ny2)
    assert jnp.allclose(p2, p2_ref, atol=1e-4, rtol=1e-4)

    print("KERNEL_OK")
</pallas_src>

<mosaic_0001>
module attributes {stable_mosaic.version = 11 : i64} {
  func.func @_pairwise_dist_kernel(%arg0: i32, %arg1: i32, %arg2: i32, %arg3: memref<1x128x3xf32, #tpu.memory_space<vmem>>, %arg4: memref<1x3x128xf32, #tpu.memory_space<vmem>>, %arg5: memref<1x128x128xf32, #tpu.memory_space<vmem>>) attributes {dimension_semantics = [#tpu.dimension_semantics<parallel>, #tpu.dimension_semantics<parallel>, #tpu.dimension_semantics<parallel>], iteration_bounds = array<i64: 2, 1, 1>, scalar_prefetch = 0 : i64, scratch_operands = 0 : i64, tpu.core_type = #tpu.core_type<tc>, window_params = [{transform_indices = @transform_0, window_bounds = array<i64: 1, 128, 3>}, {transform_indices = @transform_1, window_bounds = array<i64: 1, 3, 128>}, {transform_indices = @transform_2, window_bounds = array<i64: 1, 128, 128>}]} {
    %c0 = arith.constant 0 : index
    %c0_0 = arith.constant 0 : index
    %c0_1 = arith.constant 0 : index
    %0 = vector.load %arg3[%c0, %c0_0, %c0_1] : memref<1x128x3xf32, #tpu.memory_space<vmem>>, vector<1x128x3xf32>
    %1 = vector.shape_cast %0 : vector<1x128x3xf32> to vector<128x3xf32>
    %c0_2 = arith.constant 0 : index
    %c0_3 = arith.constant 0 : index
    %c0_4 = arith.constant 0 : index
    %2 = vector.load %arg4[%c0_2, %c0_3, %c0_4] : memref<1x3x128xf32, #tpu.memory_space<vmem>>, vector<1x3x128xf32>
    %3 = vector.shape_cast %2 : vector<1x3x128xf32> to vector<3x128xf32>
    %4 = vector.extract_strided_slice %1 {offsets = [0, 0], sizes = [128, 1], strides = [1, 1]} : vector<128x3xf32> to vector<128x1xf32>
    %5 = vector.extract_strided_slice %3 {offsets = [0, 0], sizes = [1, 128], strides = [1, 1]} : vector<3x128xf32> to vector<1x128xf32>
    %6 = arith.mulf %4, %4 : vector<128x1xf32>
    %7 = arith.mulf %5, %5 : vector<1x128xf32>
    %8 = vector.broadcast %4 : vector<128x1xf32> to vector<128x128xf32>
    %9 = vector.broadcast %5 : vector<1x128xf32> to vector<128x128xf32>
    %10 = arith.mulf %8, %9 : vector<128x128xf32>
    %11 = vector.extract_strided_slice %1 {offsets = [0, 1], sizes = [128, 1], strides = [1, 1]} : vector<128x3xf32> to vector<128x1xf32>
    %12 = vector.extract_strided_slice %3 {offsets = [1, 0], sizes = [1, 128], strides = [1, 1]} : vector<3x128xf32> to vector<1x128xf32>
    %13 = arith.mulf %11, %11 : vector<128x1xf32>
    %14 = arith.addf %6, %13 : vector<128x1xf32>
    %15 = arith.mulf %12, %12 : vector<1x128xf32>
    %16 = arith.addf %7, %15 : vector<1x128xf32>
    %17 = vector.broadcast %11 : vector<128x1xf32> to vector<128x128xf32>
    %18 = vector.broadcast %12 : vector<1x128xf32> to vector<128x128xf32>
    %19 = arith.mulf %17, %18 : vector<128x128xf32>
    %20 = arith.addf %10, %19 : vector<128x128xf32>
    %21 = vector.extract_strided_slice %1 {offsets = [0, 2], sizes = [128, 1], strides = [1, 1]} : vector<128x3xf32> to vector<128x1xf32>
    %22 = vector.extract_strided_slice %3 {offsets = [2, 0], sizes = [1, 128], strides = [1, 1]} : vector<3x128xf32> to vector<1x128xf32>
    %23 = arith.mulf %21, %21 : vector<128x1xf32>
    %24 = arith.addf %14, %23 : vector<128x1xf32>
    %25 = arith.mulf %22, %22 : vector<1x128xf32>
    %26 = arith.addf %16, %25 : vector<1x128xf32>
    %27 = vector.broadcast %21 : vector<128x1xf32> to vector<128x128xf32>
    %28 = vector.broadcast %22 : vector<1x128xf32> to vector<128x128xf32>
    %29 = arith.mulf %27, %28 : vector<128x128xf32>
    %30 = arith.addf %20, %29 : vector<128x128xf32>
    %31 = vector.broadcast %24 : vector<128x1xf32> to vector<128x128xf32>
    %32 = vector.broadcast %26 : vector<1x128xf32> to vector<128x128xf32>
    %33 = arith.addf %31, %32 : vector<128x128xf32>
    %cst = arith.constant 2.000000e+00 : f32
    %34 = vector.broadcast %cst : f32 to vector<128x128xf32>
    %35 = arith.mulf %34, %30 : vector<128x128xf32>
    %36 = arith.subf %33, %35 : vector<128x128xf32>
    %c0_5 = arith.constant 0 : index
    %c0_6 = arith.constant 0 : index
    %c0_7 = arith.constant 0 : index
    %37 = vector.load %arg5[%c0_5, %c0_6, %c0_7] : memref<1x128x128xf32, #tpu.memory_space<vmem>>, vector<1x128x128xf32>
    %38 = vector.shape_cast %37 : vector<1x128x128xf32> to vector<128x128xf32>
    %39 = vector.shape_cast %36 : vector<128x128xf32> to vector<1x128x128xf32>
    tpu.vector_store %arg5[%c0_5, %c0_6, %c0_7], %39 {strides = array<i32>} : memref<1x128x128xf32, #tpu.memory_space<vmem>>, vector<1x128x128xf32>,
    return
  }
  func.func @transform_0(%arg0: i32, %arg1: i32, %arg2: i32) -> (i32, i32, i32) {
    %c0_i32 = arith.constant 0 : i32
    %c0_i32_0 = arith.constant 0 : i32
    return %arg0, %arg1, %c0_i32 : i32, i32, i32
  }
  func.func @transform_1(%arg0: i32, %arg1: i32, %arg2: i32) -> (i32, i32, i32) {
    %c0_i32 = arith.constant 0 : i32
    %c0_i32_0 = arith.constant 0 : i32
    return %arg0, %c0_i32, %arg2 : i32, i32, i32
  }
  func.func @transform_2(%arg0: i32, %arg1: i32, %arg2: i32) -> (i32, i32, i32) {
    %c0_i32 = arith.constant 0 : i32
    return %arg0, %arg1, %arg2 : i32, i32, i32
  }
}

</mosaic_0001>

<llo_original>
// kernel: tpu_custom_call.1
$region0: #{tpu_custom_call.1}
  #allocation0 [shape = 'u32[]', space=smem, size = 0x4, offset = 0x4, fixed_abs, tag = 'smem constant byte address 0x4 - core index']
  #allocation1 [shape = 'u32[144,128]{1,0:T(1,128)}', space=vmem, size = 0x12000, scoped, tag = 'internal scratch']
  %s0 = inlined_call_operand.vmem [shape: f32[2,128,3], index: 0, kind: input, shape index: {}]
  %s1 = inlined_call_operand.vmem [shape: f32[2,3,128], index: 1, kind: input, shape index: {}]
  %s2 = inlined_call_operand.hbm [shape: f32[2,128,128], index: 2, kind: output, shape index: {}]
  %s3 = sld [smem:[#allocation0]]
  $region41: #{tpu_custom_call.1} parent=0
    _
  %s5 = ssub.s32 1, %s3
  %s6 = scalar_select 0, %s5, %s3
  $region1: #{tpu_custom_call.1} parent=0
    #allocation2 [shape = 'u8[131072]{0}', space=vmem, size = 0x20000, scoped, tag = 'output window, operand 0']
    #allocation3 [shape = 's32[2]{0}', space=sflag, size = 0x8, scoped, tag = 'scoped memory for tpu_custom_call.1']
    %7 = vsyncpa [#allocation3], 0
    %s8 = scalar_lea.sflag [#allocation3], 1
    %9 = vsyncpa %s8, 0
    loop: start=0, step=1, limit=4
    $region2: #{tpu_custom_call.1} parent=1 // loop_pre_header
      _
    $region3: #{tpu_custom_call.1} parent=1 // loop_header
      %s11 = sphi 0, %s15
      %p12 = scmp.ge.s32.totalorder %s11, 4
      %s18 = sphi 0, %s37
      %s19 = sphi 0, %s33
      %s20 = sphi 0, %s29
      %s21 = sphi 0, %s18
      %s22 = sphi 0, %s19
      %s23 = sphi 0, %s20
      %s24 = sphi 0, %s21
      %s25 = sphi 0, %s22
      %s26 = sphi 0, %s23
      %s42 = sphi 0, %s44
      %s45 = sphi 0, %s42
      %s46 = sphi 0, %s45
      %s62 = sphi 0, %s46
      %s70 = sphi 0, %s72
      %s73 = sphi 0, %s70
      %s74 = sphi 0, %s73
      %s90 = sphi 0, %s74
      %s100 = sphi 0, %s102
      %s103 = sphi 0, %s100
      %s104 = sphi 0, %s103
      %s120 = sphi 0, %s104
    $region4: #{tpu_custom_call.1} parent=1 // loop_header_branch
      %14 = sbr.rel (%p12) target = $region8
    $region5: #{tpu_custom_call.1} parent=1 // loop_body
      %s16 = ssub.s32 %s11, 1
      %s17 = ssub.s32 %s11, 2
      %s27 = sadd.s32 1, %s20
      %p28 = scmp.ge.s32.totalorder %s27, 1
      %s29 = scalar_select %p28, 0, %s27
      %s30 = sadd.s32 1, %s19
      %s31 = scalar_select %p28, %s30, %s19
      %p32 = scmp.ge.s32.totalorder %s31, 1
      %s33 = scalar_select %p32, 0, %s31
      %s34 = sadd.s32 1, %s18
      %s35 = scalar_select %p32, %s34, %s18
      %p36 = scmp.ge.s32.totalorder %s35, 2
      %s37 = scalar_select %p36, 0, %s35
      %s38 = ssub.s32 %s18, %s37
      %s39 = ssub.s32 %s19, %s33
      %s40 = sor.u32 %s38, %s39
      %p41 = scmp.eq.s32.totalorder %s40, 0
      %s43 = sadd.s32 %s42, 1
      %s44 = scalar_select %p41, %s42, %s43
      %p47 = pneg %p41
      %p48 = scmp.eq.s32.totalorder %s11, 1
      %p49 = por %p47, %p48
      %p50 = scmp.ne.s32.totalorder %s42, %s45
      %p51 = scmp.eq.s32.totalorder %s11, 0
      %p52 = por %p50, %p51
      %p53 = scmp.ne.s32.totalorder %s42, %s45
      %p54 = scmp.eq.s32.totalorder %s16, 1
      %p55 = por %p53, %p54
      %p56 = scmp.ne.s32.totalorder %s45, %s46
      %p57 = scmp.eq.s32.totalorder %s16, 0
      %p58 = por %p56, %p57
      %p59 = scmp.ne.s32.totalorder %s45, %s46
      %p60 = scmp.eq.s32.totalorder %s17, 1
      %p61 = por %p59, %p60
      %p63 = scmp.ne.s32.totalorder %s46, %s62
      %p64 = scmp.eq.s32.totalorder %s17, 0
      %p65 = por %p63, %p64
      %s66 = ssub.s32 %s18, %s37
      %s67 = ssub.s32 %s20, %s29
      %s68 = sor.u32 %s66, %s67
      %p69 = scmp.eq.s32.totalorder %s68, 0
      %s71 = sadd.s32 %s70, 1
      %s72 = scalar_select %p69, %s70, %s71
      %p75 = pneg %p69
      %p76 = scmp.eq.s32.totalorder %s11, 1
      %p77 = por %p75, %p76
      %p78 = scmp.ne.s32.totalorder %s70, %s73
      %p79 = scmp.eq.s32.totalorder %s11, 0
      %p80 = por %p78, %p79
      %p81 = scmp.ne.s32.totalorder %s70, %s73
      %p82 = scmp.eq.s32.totalorder %s16, 1
      %p83 = por %p81, %p82
      %p84 = scmp.ne.s32.totalorder %s73, %s74
      %p85 = scmp.eq.s32.totalorder %s16, 0
      %p86 = por %p84, %p85
      %p87 = scmp.ne.s32.totalorder %s73, %s74
      %p88 = scmp.eq.s32.totalorder %s17, 1
      %p89 = por %p87, %p88
      %p91 = scmp.ne.s32.totalorder %s74, %s90
      %p92 = scmp.eq.s32.totalorder %s17, 0
      %p93 = por %p91, %p92
      %s94 = ssub.s32 %s18, %s37
      %s95 = ssub.s32 %s19, %s33
      %s96 = sor.u32 %s94, %s95
      %s97 = ssub.s32 %s20, %s29
      %s98 = sor.u32 %s96, %s97
      %p99 = scmp.eq.s32.totalorder %s98, 0
      %s101 = sadd.s32 %s100, 1
      %s102 = scalar_select %p99, %s100, %s101
      %p105 = pneg %p99
      %p106 = scmp.eq.s32.totalorder %s11, 1
      %p107 = por %p105, %p106
      %p108 = scmp.ne.s32.totalorder %s100, %s103
      %p109 = scmp.eq.s32.totalorder %s11, 0
      %p110 = por %p108, %p109
      %p111 = scmp.ne.s32.totalorder %s100, %s103
      %p112 = scmp.eq.s32.totalorder %s16, 1
      %p113 = por %p111, %p112
      %p114 = scmp.ne.s32.totalorder %s103, %s104
      %p115 = scmp.eq.s32.totalorder %s16, 0
      %p116 = por %p114, %p115
      %p117 = scmp.ne.s32.totalorder %s103, %s104
      %p118 = scmp.eq.s32.totalorder %s17, 1
      %p119 = por %p117, %p118
      %p121 = scmp.ne.s32.totalorder %s104, %s120
      %p122 = scmp.eq.s32.totalorder %s17, 0
      %p123 = por %p121, %p122
      %p124 = scmp.le.s32.totalorder 1, %s11
      %p125 = scmp.lt.s32.totalorder %s11, 3
      %p126 = pnand %p124, %p125
      %p127 = pneg %p126
      // Predicated region
      $region9: #{tpu_custom_call.1} parent=5 // pred_check
        _
      $region10: #{tpu_custom_call.1} parent=5 // pred_check_branch
        %129 = sbr.rel (%p126) target = $region12
      $region11: #{tpu_custom_call.1} parent=5 // pred_region
        %s130 = ssub.s32 %s11, 1
      $region12: #{tpu_custom_call.1} parent=5 // pred_fallthru
        _
      %p131 = scmp.lt.s32.totalorder %s11, 2
      // Predicated region
      $region13: #{tpu_custom_call.1} parent=5 // pred_check
        %p132 = pneg %p131
      $region14: #{tpu_custom_call.1} parent=5 // pred_check_branch
        %134 = sbr.rel (%p132) target = $region16
      $region15: #{tpu_custom_call.1} parent=5 // pred_region
        // Predicated region
        $region17: #{tpu_custom_call.1} parent=15 // pred_check
          %p135 = pneg %p52
        $region18: #{tpu_custom_call.1} parent=15 // pred_check_branch
          %137 = sbr.rel (%p135) target = $region20
        $region19: #{tpu_custom_call.1} parent=15 // pred_region
          %s138 = smul.u32 16, %s19
          %p139 = scmp.lt.s32.totalorder %s18, 1
          %s140 = scalar_select %p139, %s18, 1
          %p141 = scmp.lt.s32.totalorder %s138, 15
          %s142 = scalar_select %p141, %s138, 15
          %s143 = smul.addr %s140, 16
          %s144 = sadd.s32 %s142, %s143
          %s145 = smul.addr %s144, 8
          %s146 = scalar_lea.vmem %s0, %s145
          %s147 = smul.u32 16, %s19
        $region20: #{tpu_custom_call.1} parent=15 // pred_fallthru
          _
        // Predicated region
        $region21: #{tpu_custom_call.1} parent=15 // pred_check
          %p148 = pneg %p80
        $region22: #{tpu_custom_call.1} parent=15 // pred_check_branch
          %150 = sbr.rel (%p148) target = $region24
        $region23: #{tpu_custom_call.1} parent=15 // pred_region
          %p151 = scmp.lt.s32.totalorder %s18, 1
          %s152 = scalar_select %p151, %s18, 1
          %p153 = scmp.lt.s32.totalorder %s20, 0
          %s154 = scalar_select %p153, %s20, 0
          %s155 = sadd.s32 %s154, %s152
          %s156 = smul.addr %s155, 4
          %s157 = scalar_lea.vmem %s1, %s156
        $region24: #{tpu_custom_call.1} parent=15 // pred_fallthru
          _
      $region16: #{tpu_custom_call.1} parent=5 // pred_fallthru
        _
      %p158 = scmp.le.s32.totalorder 1, %s11
      %p159 = scmp.lt.s32.totalorder %s11, 3
      %p160 = pnand %p158, %p159
      %p161 = pneg %p160
      // Predicated region
      $region25: #{tpu_custom_call.1} parent=5 // pred_check
        _
      $region26: #{tpu_custom_call.1} parent=5 // pred_check_branch
        %163 = sbr.rel (%p160) target = $region28
      $region27: #{tpu_custom_call.1} parent=5 // pred_region
        %s164 = ssub.s32 %s11, 1
        %s165 = smul.u32 16, %s22
        %p166 = scmp.lt.s32.totalorder %s21, 1
        %s167 = scalar_select %p166, %s21, 1
        %p168 = scmp.lt.s32.totalorder %s165, 15
        %s169 = scalar_select %p168, %s165, 15
        %s170 = smul.addr %s167, 16
        %s171 = sadd.s32 %s169, %s170
        %s172 = smul.addr %s171, 8
        %s173 = scalar_lea.vmem %s0, %s172
        %p174 = pneg %p58
        %p175 = pneg %p55
        %p176 = scmp.lt.s32.totalorder %s21, 1
        %s177 = scalar_select %p176, %s21, 1
        %p178 = scmp.lt.s32.totalorder %s23, 0
        %s179 = scalar_select %p178, %s23, 0
        %s180 = sadd.s32 %s179, %s177
        %s181 = smul.addr %s180, 4
        %s182 = scalar_lea.vmem %s1, %s181
        %p183 = pneg %p86
        %p184 = pneg %p83
        %p185 = pneg %p116
        %p186 = pneg %p113
        %s187 = sand.u32 %s103, 1
        %s188 = scalar_lea.sflag [#allocation3], %s187
        %s189 = sand.u32 %s103, 1
        %s190 = smul.addr %s189, 128
        %s191 = scalar_lea.vmem [#allocation2], %s190
        %s192 = smul.u32 16, %s22
        %p193 = scmp.lt.s32.totalorder %s21, 1
        %s194 = scalar_select %p193, %s21, 1
        %p195 = scmp.lt.s32.totalorder %s192, 15
        %s196 = scalar_select %p195, %s192, 15
        %s197 = smul.addr %s194, 16
        %s198 = sadd.s32 %s196, %s197
        %s199 = smul.addr %s198, 8
        %s200 = scalar_lea.vmem %s0, %s199
        %s201 = smul.u32 16, %s22
        %p202 = scmp.lt.s32.totalorder %s21, 1
        %s203 = scalar_select %p202, %s21, 1
        %p204 = scmp.lt.s32.totalorder %s23, 0
        %s205 = scalar_select %p204, %s23, 0
        %s206 = sadd.s32 %s205, %s203
        %s207 = smul.addr %s206, 4
        %s208 = scalar_lea.vmem %s1, %s207
        %s209 = smul.u32 16, %s22
        %v210 = vld [vmem:[%s200] sm:$0xff]
        %v211 = vld [vmem:[%s200 + $0x8] sm:$0xff]
        %v212 = vld [vmem:[%s200 + $0x10] sm:$0xff]
        %v213 = vld [vmem:[%s200 + $0x18] sm:$0xff]
        %v214 = vld [vmem:[%s200 + $0x20] sm:$0xff]
        %v215 = vld [vmem:[%s200 + $0x28] sm:$0xff]
        %v216 = vld [vmem:[%s200 + $0x30] sm:$0xff]
        %v217 = vld [vmem:[%s200 + $0x38] sm:$0xff]
        %v218 = vld [vmem:[%s200 + $0x40] sm:$0xff]
        %v219 = vld [vmem:[%s200 + $0x48] sm:$0xff]
        %v220 = vld [vmem:[%s200 + $0x50] sm:$0xff]
        %v221 = vld [vmem:[%s200 + $0x58] sm:$0xff]
        %v222 = vld [vmem:[%s200 + $0x60] sm:$0xff]
        %v223 = vld [vmem:[%s200 + $0x68] sm:$0xff]
        %v224 = vld [vmem:[%s200 + $0x70] sm:$0xff]
        %v225 = vld [vmem:[%s200 + $0x78] sm:$0xff]
        %v226 = vld [vmem:[%s208] sm:$0x7]
        %v227 = vmul.f32 %v210, %v210
        %v228 = vmul.f32 %v211, %v211
        %v229 = vmul.f32 %v212, %v212
        %v230 = vmul.f32 %v213, %v213
        %v231 = vmul.f32 %v214, %v214
        %v232 = vmul.f32 %v215, %v215
        %v233 = vmul.f32 %v216, %v216
        %v234 = vmul.f32 %v217, %v217
        %v235 = vmul.f32 %v218, %v218
        %v236 = vmul.f32 %v219, %v219
        %v237 = vmul.f32 %v220, %v220
        %v238 = vmul.f32 %v221, %v221
        %v239 = vmul.f32 %v222, %v222
        %v240 = vmul.f32 %v223, %v223
        %v241 = vmul.f32 %v224, %v224
        %v242 = vmul.f32 %v225, %v225
        %v243 = vmul.f32 %v226, %v226
        %245 = vset.pattern.permute.xlu0 0
        %246 = vperm.xlu0 %245, %v210
        %v247 = vpop.permute.xlu0 %246
        %250 = vset.pattern.permute.xlu0 0
        %251 = vperm.xlu0 %250, %v211
        %v252 = vpop.permute.xlu0 %251
        %255 = vset.pattern.permute.xlu0 0
        %256 = vperm.xlu0 %255, %v212
        %v257 = vpop.permute.xlu0 %256
        %260 = vset.pattern.permute.xlu0 0
        %261 = vperm.xlu0 %260, %v213
        %v262 = vpop.permute.xlu0 %261
        %265 = vset.pattern.permute.xlu0 0
        %266 = vperm.xlu0 %265, %v214
        %v267 = vpop.permute.xlu0 %266
        %270 = vset.pattern.permute.xlu0 0
        %271 = vperm.xlu0 %270, %v215
        %v272 = vpop.permute.xlu0 %271
        %275 = vset.pattern.permute.xlu0 0
        %276 = vperm.xlu0 %275, %v216
        %v277 = vpop.permute.xlu0 %276
        %280 = vset.pattern.permute.xlu0 0
        %281 = vperm.xlu0 %280, %v217
        %v282 = vpop.permute.xlu0 %281
        %285 = vset.pattern.permute.xlu0 0
        %286 = vperm.xlu0 %285, %v218
        %v287 = vpop.permute.xlu0 %286
        %290 = vset.pattern.permute.xlu0 0
        %291 = vperm.xlu0 %290, %v219
        %v292 = vpop.permute.xlu0 %291
        %295 = vset.pattern.permute.xlu0 0
        %296 = vperm.xlu0 %295, %v220
        %v297 = vpop.permute.xlu0 %296
        %300 = vset.pattern.permute.xlu0 0
        %301 = vperm.xlu0 %300, %v221
        %v302 = vpop.permute.xlu0 %301
        %305 = vset.pattern.permute.xlu0 0
        %306 = vperm.xlu0 %305, %v222
        %v307 = vpop.permute.xlu0 %306
        %310 = vset.pattern.permute.xlu0 0
        %311 = vperm.xlu0 %310, %v223
        %v312 = vpop.permute.xlu0 %311
        %315 = vset.pattern.permute.xlu0 0
        %316 = vperm.xlu0 %315, %v224
        %v317 = vpop.permute.xlu0 %316
        %320 = vset.pattern.permute.xlu0 0
        %321 = vperm.xlu0 %320, %v225
        %v322 = vpop.permute.xlu0 %321
        %v324 = vlaneseq
        %v325 = vshrl.u32 %v324, 7
        %v326 = vsub.s32 0, %v325
        %v327 = vrot.slane %v226, %v326
        %v328 = vmul.f32 %v247, %v327
        %v329 = vmul.f32 %v252, %v327
        %v330 = vmul.f32 %v257, %v327
        %v331 = vmul.f32 %v262, %v327
        %v332 = vmul.f32 %v267, %v327
        %v333 = vmul.f32 %v272, %v327
        %v334 = vmul.f32 %v277, %v327
        %v335 = vmul.f32 %v282, %v327
        %v336 = vmul.f32 %v287, %v327
        %v337 = vmul.f32 %v292, %v327
        %v338 = vmul.f32 %v297, %v327
        %v339 = vmul.f32 %v302, %v327
        %v340 = vmul.f32 %v307, %v327
        %v341 = vmul.f32 %v312, %v327
        %v342 = vmul.f32 %v317, %v327
        %v343 = vmul.f32 %v322, %v327
        %360 = vrot.lane.b32.xlu0 %v227, 127
        %v361 = vpop.permute.xlu0 %360
        %362 = vrot.lane.b32.xlu0 %v228, 127
        %v363 = vpop.permute.xlu0 %362
        %364 = vrot.lane.b32.xlu0 %v229, 127
        %v365 = vpop.permute.xlu0 %364
        %366 = vrot.lane.b32.xlu0 %v230, 127
        %v367 = vpop.permute.xlu0 %366
        %368 = vrot.lane.b32.xlu0 %v231, 127
        %v369 = vpop.permute.xlu0 %368
        %370 = vrot.lane.b32.xlu0 %v232, 127
        %v371 = vpop.permute.xlu0 %370
        %372 = vrot.lane.b32.xlu0 %v233, 127
        %v373 = vpop.permute.xlu0 %372
        %374 = vrot.lane.b32.xlu0 %v234, 127
        %v375 = vpop.permute.xlu0 %374
        %376 = vrot.lane.b32.xlu0 %v235, 127
        %v377 = vpop.permute.xlu0 %376
        %378 = vrot.lane.b32.xlu0 %v236, 127
        %v379 = vpop.permute.xlu0 %378
        %380 = vrot.lane.b32.xlu0 %v237, 127
        %v381 = vpop.permute.xlu0 %380
        %382 = vrot.lane.b32.xlu0 %v238, 127
        %v383 = vpop.permute.xlu0 %382
        %384 = vrot.lane.b32.xlu0 %v239, 127
        %v385 = vpop.permute.xlu0 %384
        %386 = vrot.lane.b32.xlu0 %v240, 127
        %v387 = vpop.permute.xlu0 %386
        %388 = vrot.lane.b32.xlu0 %v241, 127
        %v389 = vpop.permute.xlu0 %388
        %390 = vrot.lane.b32.xlu0 %v242, 127
        %v391 = vpop.permute.xlu0 %390
        %v408 = vadd.f32 %v227, %v361
        %v409 = vadd.f32 %v228, %v363
        %v410 = vadd.f32 %v229, %v365
        %v411 = vadd.f32 %v230, %v367
        %v412 = vadd.f32 %v231, %v369
        %v413 = vadd.f32 %v232, %v371
        %v414 = vadd.f32 %v233, %v373
        %v415 = vadd.f32 %v234, %v375
        %v416 = vadd.f32 %v235, %v377
        %v417 = vadd.f32 %v236, %v379
        %v418 = vadd.f32 %v237, %v381
        %v419 = vadd.f32 %v238, %v383
        %v420 = vadd.f32 %v239, %v385
        %v421 = vadd.f32 %v240, %v387
        %v422 = vadd.f32 %v241, %v389
        %v423 = vadd.f32 %v242, %v391
        %v425 = vrot.slane %v243, 1
        %v427 = vadd.f32 %v243, %v425
        %428 = vset.pattern.permute.xlu0 1
        %429 = vperm.xlu0 %428, %v210
        %v430 = vpop.permute.xlu0 %429
        %432 = vset.pattern.permute.xlu0 1
        %433 = vperm.xlu0 %432, %v211
        %v434 = vpop.permute.xlu0 %433
        %436 = vset.pattern.permute.xlu0 1
        %437 = vperm.xlu0 %436, %v212
        %v438 = vpop.permute.xlu0 %437
        %440 = vset.pattern.permute.xlu0 1
        %441 = vperm.xlu0 %440, %v213
        %v442 = vpop.permute.xlu0 %441
        %444 = vset.pattern.permute.xlu0 1
        %445 = vperm.xlu0 %444, %v214
        %v446 = vpop.permute.xlu0 %445
        %448 = vset.pattern.permute.xlu0 1
        %449 = vperm.xlu0 %448, %v215
        %v450 = vpop.permute.xlu0 %449
        %452 = vset.pattern.permute.xlu0 1
        %453 = vperm.xlu0 %452, %v216
        %v454 = vpop.permute.xlu0 %453
        %456 = vset.pattern.permute.xlu0 1
        %457 = vperm.xlu0 %456, %v217
        %v458 = vpop.permute.xlu0 %457
        %460 = vset.pattern.permute.xlu0 1
        %461 = vperm.xlu0 %460, %v218
        %v462 = vpop.permute.xlu0 %461
        %464 = vset.pattern.permute.xlu0 1
        %465 = vperm.xlu0 %464, %v219
        %v466 = vpop.permute.xlu0 %465
        %468 = vset.pattern.permute.xlu0 1
        %469 = vperm.xlu0 %468, %v220
        %v470 = vpop.permute.xlu0 %469
        %472 = vset.pattern.permute.xlu0 1
        %473 = vperm.xlu0 %472, %v221
        %v474 = vpop.permute.xlu0 %473
        %476 = vset.pattern.permute.xlu0 1
        %477 = vperm.xlu0 %476, %v222
        %v478 = vpop.permute.xlu0 %477
        %480 = vset.pattern.permute.xlu0 1
        %481 = vperm.xlu0 %480, %v223
        %v482 = vpop.permute.xlu0 %481
        %484 = vset.pattern.permute.xlu0 1
        %485 = vperm.xlu0 %484, %v224
        %v486 = vpop.permute.xlu0 %485
        %488 = vset.pattern.permute.xlu0 1
        %489 = vperm.xlu0 %488, %v225
        %v490 = vpop.permute.xlu0 %489
        %v492 = vlaneseq
        %v493 = vshrl.u32 %v492, 7
        %v494 = vsub.s32 1, %v493
        %v495 = vrot.slane %v226, %v494
        %v496 = vmul.f32 %v430, %v495
        %v497 = vmul.f32 %v434, %v495
        %v498 = vmul.f32 %v438, %v495
        %v499 = vmul.f32 %v442, %v495
        %v500 = vmul.f32 %v446, %v495
        %v501 = vmul.f32 %v450, %v495
        %v502 = vmul.f32 %v454, %v495
        %v503 = vmul.f32 %v458, %v495
        %v504 = vmul.f32 %v462, %v495
        %v505 = vmul.f32 %v466, %v495
        %v506 = vmul.f32 %v470, %v495
        %v507 = vmul.f32 %v474, %v495
        %v508 = vmul.f32 %v478, %v495
        %v509 = vmul.f32 %v482, %v495
        %v510 = vmul.f32 %v486, %v495
        %v511 = vmul.f32 %v490, %v495
        %v512 = vadd.f32 %v328, %v496
        %v513 = vadd.f32 %v329, %v497
        %v514 = vadd.f32 %v330, %v498
        %v515 = vadd.f32 %v331, %v499
        %v516 = vadd.f32 %v332, %v500
        %v517 = vadd.f32 %v333, %v501
        %v518 = vadd.f32 %v334, %v502
        %v519 = vadd.f32 %v335, %v503
        %v520 = vadd.f32 %v336, %v504
        %v521 = vadd.f32 %v337, %v505
        %v522 = vadd.f32 %v338, %v506
        %v523 = vadd.f32 %v339, %v507
        %v524 = vadd.f32 %v340, %v508
        %v525 = vadd.f32 %v341, %v509
        %v526 = vadd.f32 %v342, %v510
        %v527 = vadd.f32 %v343, %v511
        %528 = vrot.lane.b32.xlu0 %v227, 126
        %v529 = vpop.permute.xlu0 %528
        %530 = vrot.lane.b32.xlu0 %v228, 126
        %v531 = vpop.permute.xlu0 %530
        %532 = vrot.lane.b32.xlu0 %v229, 126
        %v533 = vpop.permute.xlu0 %532
        %534 = vrot.lane.b32.xlu0 %v230, 126
        %v535 = vpop.permute.xlu0 %534
        %536 = vrot.lane.b32.xlu0 %v231, 126
        %v537 = vpop.permute.xlu0 %536
        %538 = vrot.lane.b32.xlu0 %v232, 126
        %v539 = vpop.permute.xlu0 %538
        %540 = vrot.lane.b32.xlu0 %v233, 126
        %v541 = vpop.permute.xlu0 %540
        %542 = vrot.lane.b32.xlu0 %v234, 126
        %v543 = vpop.permute.xlu0 %542
        %544 = vrot.lane.b32.xlu0 %v235, 126
        %v545 = vpop.permute.xlu0 %544
        %546 = vrot.lane.b32.xlu0 %v236, 126
        %v547 = vpop.permute.xlu0 %546
        %548 = vrot.lane.b32.xlu0 %v237, 126
        %v549 = vpop.permute.xlu0 %548
        %550 = vrot.lane.b32.xlu0 %v238, 126
        %v551 = vpop.permute.xlu0 %550
        %552 = vrot.lane.b32.xlu0 %v239, 126
        %v553 = vpop.permute.xlu0 %552
        %554 = vrot.lane.b32.xlu0 %v240, 126
        %v555 = vpop.permute.xlu0 %554
        %556 = vrot.lane.b32.xlu0 %v241, 126
        %v557 = vpop.permute.xlu0 %556
        %558 = vrot.lane.b32.xlu0 %v242, 126
        %v559 = vpop.permute.xlu0 %558
        %v576 = vadd.f32 %v408, %v529
        %v577 = vadd.f32 %v409, %v531
        %v578 = vadd.f32 %v410, %v533
        %v579 = vadd.f32 %v411, %v535
        %v580 = vadd.f32 %v412, %v537
        %v581 = vadd.f32 %v413, %v539
        %v582 = vadd.f32 %v414, %v541
        %v583 = vadd.f32 %v415, %v543
        %v584 = vadd.f32 %v416, %v545
        %v585 = vadd.f32 %v417, %v547
        %v586 = vadd.f32 %v418, %v549
        %v587 = vadd.f32 %v419, %v551
        %v588 = vadd.f32 %v420, %v553
        %v589 = vadd.f32 %v421, %v555
        %v590 = vadd.f32 %v422, %v557
        %v591 = vadd.f32 %v423, %v559
        %v592 = vrot.slane %v243, 2
        %v594 = vadd.f32 %v427, %v592
        %595 = vset.pattern.permute.xlu0 2
        %596 = vperm.xlu0 %595, %v210
        %v597 = vpop.permute.xlu0 %596
        %599 = vset.pattern.permute.xlu0 2
        %600 = vperm.xlu0 %599, %v211
        %v601 = vpop.permute.xlu0 %600
        %603 = vset.pattern.permute.xlu0 2
        %604 = vperm.xlu0 %603, %v212
        %v605 = vpop.permute.xlu0 %604
        %607 = vset.pattern.permute.xlu0 2
        %608 = vperm.xlu0 %607, %v213
        %v609 = vpop.permute.xlu0 %608
        %611 = vset.pattern.permute.xlu0 2
        %612 = vperm.xlu0 %611, %v214
        %v613 = vpop.permute.xlu0 %612
        %615 = vset.pattern.permute.xlu0 2
        %616 = vperm.xlu0 %615, %v215
        %v617 = vpop.permute.xlu0 %616
        %619 = vset.pattern.permute.xlu0 2
        %620 = vperm.xlu0 %619, %v216
        %v621 = vpop.permute.xlu0 %620
        %623 = vset.pattern.permute.xlu0 2
        %624 = vperm.xlu0 %623, %v217
        %v625 = vpop.permute.xlu0 %624
        %627 = vset.pattern.permute.xlu0 2
        %628 = vperm.xlu0 %627, %v218
        %v629 = vpop.permute.xlu0 %628
        %631 = vset.pattern.permute.xlu0 2
        %632 = vperm.xlu0 %631, %v219
        %v633 = vpop.permute.xlu0 %632
        %635 = vset.pattern.permute.xlu0 2
        %636 = vperm.xlu0 %635, %v220
        %v637 = vpop.permute.xlu0 %636
        %639 = vset.pattern.permute.xlu0 2
        %640 = vperm.xlu0 %639, %v221
        %v641 = vpop.permute.xlu0 %640
        %643 = vset.pattern.permute.xlu0 2
        %644 = vperm.xlu0 %643, %v222
        %v645 = vpop.permute.xlu0 %644
        %647 = vset.pattern.permute.xlu0 2
        %648 = vperm.xlu0 %647, %v223
        %v649 = vpop.permute.xlu0 %648
        %651 = vset.pattern.permute.xlu0 2
        %652 = vperm.xlu0 %651, %v224
        %v653 = vpop.permute.xlu0 %652
        %655 = vset.pattern.permute.xlu0 2
        %656 = vperm.xlu0 %655, %v225
        %v657 = vpop.permute.xlu0 %656
        %v659 = vlaneseq
        %v660 = vshrl.u32 %v659, 7
        %v661 = vsub.s32 2, %v660
        %v662 = vrot.slane %v226, %v661
        %v663 = vmul.f32 %v597, %v662
        %v664 = vmul.f32 %v601, %v662
        %v665 = vmul.f32 %v605, %v662
        %v666 = vmul.f32 %v609, %v662
        %v667 = vmul.f32 %v613, %v662
        %v668 = vmul.f32 %v617, %v662
        %v669 = vmul.f32 %v621, %v662
        %v670 = vmul.f32 %v625, %v662
        %v671 = vmul.f32 %v629, %v662
        %v672 = vmul.f32 %v633, %v662
        %v673 = vmul.f32 %v637, %v662
        %v674 = vmul.f32 %v641, %v662
        %v675 = vmul.f32 %v645, %v662
        %v676 = vmul.f32 %v649, %v662
        %v677 = vmul.f32 %v653, %v662
        %v678 = vmul.f32 %v657, %v662
        %v679 = vadd.f32 %v512, %v663
        %v680 = vadd.f32 %v513, %v664
        %v681 = vadd.f32 %v514, %v665
        %v682 = vadd.f32 %v515, %v666
        %v683 = vadd.f32 %v516, %v667
        %v684 = vadd.f32 %v517, %v668
        %v685 = vadd.f32 %v518, %v669
        %v686 = vadd.f32 %v519, %v670
        %v687 = vadd.f32 %v520, %v671
        %v688 = vadd.f32 %v521, %v672
        %v689 = vadd.f32 %v522, %v673
        %v690 = vadd.f32 %v523, %v674
        %v691 = vadd.f32 %v524, %v675
        %v692 = vadd.f32 %v525, %v676
        %v693 = vadd.f32 %v526, %v677
        %v694 = vadd.f32 %v527, %v678
        %696 = vset.pattern.permute.xlu0 0
        %697 = vperm.xlu0 %696, %v576
        %v698 = vpop.permute.xlu0 %697
        %701 = vset.pattern.permute.xlu0 0
        %702 = vperm.xlu0 %701, %v577
        %v703 = vpop.permute.xlu0 %702
        %706 = vset.pattern.permute.xlu0 0
        %707 = vperm.xlu0 %706, %v578
        %v708 = vpop.permute.xlu0 %707
        %711 = vset.pattern.permute.xlu0 0
        %712 = vperm.xlu0 %711, %v579
        %v713 = vpop.permute.xlu0 %712
        %716 = vset.pattern.permute.xlu0 0
        %717 = vperm.xlu0 %716, %v580
        %v718 = vpop.permute.xlu0 %717
        %721 = vset.pattern.permute.xlu0 0
        %722 = vperm.xlu0 %721, %v581
        %v723 = vpop.permute.xlu0 %722
        %726 = vset.pattern.permute.xlu0 0
        %727 = vperm.xlu0 %726, %v582
        %v728 = vpop.permute.xlu0 %727
        %731 = vset.pattern.permute.xlu0 0
        %732 = vperm.xlu0 %731, %v583
        %v733 = vpop.permute.xlu0 %732
        %736 = vset.pattern.permute.xlu0 0
        %737 = vperm.xlu0 %736, %v584
        %v738 = vpop.permute.xlu0 %737
        %741 = vset.pattern.permute.xlu0 0
        %742 = vperm.xlu0 %741, %v585
        %v743 = vpop.permute.xlu0 %742
        %746 = vset.pattern.permute.xlu0 0
        %747 = vperm.xlu0 %746, %v586
        %v748 = vpop.permute.xlu0 %747
        %751 = vset.pattern.permute.xlu0 0
        %752 = vperm.xlu0 %751, %v587
        %v753 = vpop.permute.xlu0 %752
        %756 = vset.pattern.permute.xlu0 0
        %757 = vperm.xlu0 %756, %v588
        %v758 = vpop.permute.xlu0 %757
        %761 = vset.pattern.permute.xlu0 0
        %762 = vperm.xlu0 %761, %v589
        %v763 = vpop.permute.xlu0 %762
        %766 = vset.pattern.permute.xlu0 0
        %767 = vperm.xlu0 %766, %v590
        %v768 = vpop.permute.xlu0 %767
        %771 = vset.pattern.permute.xlu0 0
        %772 = vperm.xlu0 %771, %v591
        %v773 = vpop.permute.xlu0 %772
        %v775 = vlaneseq
        %v776 = vshrl.u32 %v775, 7
        %v777 = vsub.s32 0, %v776
        %v778 = vrot.slane %v594, %v777
        %v779 = vadd.f32 %v698, %v778
        %v780 = vadd.f32 %v703, %v778
        %v781 = vadd.f32 %v708, %v778
        %v782 = vadd.f32 %v713, %v778
        %v783 = vadd.f32 %v718, %v778
        %v784 = vadd.f32 %v723, %v778
        %v785 = vadd.f32 %v728, %v778
        %v786 = vadd.f32 %v733, %v778
        %v787 = vadd.f32 %v738, %v778
        %v788 = vadd.f32 %v743, %v778
        %v789 = vadd.f32 %v748, %v778
        %v790 = vadd.f32 %v753, %v778
        %v791 = vadd.f32 %v758, %v778
        %v792 = vadd.f32 %v763, %v778
        %v793 = vadd.f32 %v768, %v778
        %v794 = vadd.f32 %v773, %v778
        %v795 = vmul.f32 %v679, 2.0
        %v796 = vmul.f32 %v680, 2.0
        %v797 = vmul.f32 %v681, 2.0
        %v798 = vmul.f32 %v682, 2.0
        %v799 = vmul.f32 %v683, 2.0
        %v800 = vmul.f32 %v684, 2.0
        %v801 = vmul.f32 %v685, 2.0
        %v802 = vmul.f32 %v686, 2.0
        %v803 = vmul.f32 %v687, 2.0
        %v804 = vmul.f32 %v688, 2.0
        %v805 = vmul.f32 %v689, 2.0
        %v806 = vmul.f32 %v690, 2.0
        %v807 = vmul.f32 %v691, 2.0
        %v808 = vmul.f32 %v692, 2.0
        %v809 = vmul.f32 %v693, 2.0
        %v810 = vmul.f32 %v694, 2.0
        %v811 = vsub.f32 %v779, %v795
        %v812 = vsub.f32 %v780, %v796
        %v813 = vsub.f32 %v781, %v797
        %v814 = vsub.f32 %v782, %v798
        %v815 = vsub.f32 %v783, %v799
        %v816 = vsub.f32 %v784, %v800
        %v817 = vsub.f32 %v785, %v801
        %v818 = vsub.f32 %v786, %v802
        %v819 = vsub.f32 %v787, %v803
        %v820 = vsub.f32 %v788, %v804
        %v821 = vsub.f32 %v789, %v805
        %v822 = vsub.f32 %v790, %v806
        %v823 = vsub.f32 %v791, %v807
        %v824 = vsub.f32 %v792, %v808
        %v825 = vsub.f32 %v793, %v809
        %v826 = vsub.f32 %v794, %v810
        %827 = vst [vmem:[%s191] sm:$0xff] %v811
        %828 = vst [vmem:[%s191 + $0x8] sm:$0xff] %v812
        %829 = vst [vmem:[%s191 + $0x10] sm:$0xff] %v813
        %830 = vst [vmem:[%s191 + $0x18] sm:$0xff] %v814
        %831 = vst [vmem:[%s191 + $0x20] sm:$0xff] %v815
        %832 = vst [vmem:[%s191 + $0x28] sm:$0xff] %v816
        %833 = vst [vmem:[%s191 + $0x30] sm:$0xff] %v817
        %834 = vst [vmem:[%s191 + $0x38] sm:$0xff] %v818
        %835 = vst [vmem:[%s191 + $0x40] sm:$0xff] %v819
        %836 = vst [vmem:[%s191 + $0x48] sm:$0xff] %v820
        %837 = vst [vmem:[%s191 + $0x50] sm:$0xff] %v821
        %838 = vst [vmem:[%s191 + $0x58] sm:$0xff] %v822
        %839 = vst [vmem:[%s191 + $0x60] sm:$0xff] %v823
        %840 = vst [vmem:[%s191 + $0x68] sm:$0xff] %v824
        %841 = vst [vmem:[%s191 + $0x70] sm:$0xff] %v825
        %842 = vst [vmem:[%s191 + $0x78] sm:$0xff] %v826
        %s843 = sand.u32 %s103, 1
        %s844 = scalar_lea.sflag [#allocation3], %s843
        %s845 = sand.u32 %s103, 1
        %s846 = smul.addr %s845, 128
        %s847 = scalar_lea.vmem [#allocation2], %s846
        // Predicated region
        $region29: #{tpu_custom_call.1} parent=27 // pred_check
          %p848 = pneg %p113
        $region30: #{tpu_custom_call.1} parent=27 // pred_check_branch
          %850 = sbr.rel (%p848) target = $region32
        $region31: #{tpu_custom_call.1} parent=27 // pred_region
          %s851 = smul.u32 16, %s22
          %s853 = ssub.s32 2048, 2048
          %854 = vsyncadd %s844, %s853
          %s855 = sadd.s32 %s23, %s851
          %s856 = smul.addr %s21, 16
          %s857 = sadd.s32 %s855, %s856
          %s858 = smul.addr %s857, 128
          %s859 = scalar_lea.hbm %s2, %s858
          %s860 = sshll.u32 %s847, 4
          %s861 = int_to_ptr.vmem [resolvable:$true] %s860
          %866 = dma.vmem_to_hbm [thread:$0]  %s861, 2048, %s859, %s844, 128, 128, 8
        $region32: #{tpu_custom_call.1} parent=27 // pred_fallthru
          _
      $region28: #{tpu_custom_call.1} parent=5 // pred_fallthru
        _
      %p867 = scmp.le.s32.totalorder 2, %s11
      // Predicated region
      $region33: #{tpu_custom_call.1} parent=5 // pred_check
        %p868 = pneg %p867
      $region34: #{tpu_custom_call.1} parent=5 // pred_check_branch
        %870 = sbr.rel (%p868) target = $region36
      $region35: #{tpu_custom_call.1} parent=5 // pred_region
        %s871 = ssub.s32 %s11, 2
        // Predicated region
        $region37: #{tpu_custom_call.1} parent=35 // pred_check
          %p872 = pneg %p119
        $region38: #{tpu_custom_call.1} parent=35 // pred_check_branch
          %874 = sbr.rel (%p872) target = $region40
        $region39: #{tpu_custom_call.1} parent=35 // pred_region
          %s875 = sand.u32 %s104, 1
          %s876 = scalar_lea.sflag [#allocation3], %s875
          %s877 = sand.u32 %s104, 1
          %s878 = smul.addr %s877, 128
          %s879 = scalar_lea.vmem [#allocation2], %s878
          %880 = dma.done %s876, 2048
        $region40: #{tpu_custom_call.1} parent=35 // pred_fallthru
          _
      $region36: #{tpu_custom_call.1} parent=5 // pred_fallthru
        _
    $region6: #{tpu_custom_call.1} parent=1 // loop_footer
      %s15 = sadd.s32 1, %s11
    $region7: #{tpu_custom_call.1} parent=1 // loop_footer_branch
      %10 = sbr.rel target = $region3
    $region8: #{tpu_custom_call.1} parent=1 // loop_exit
      _
    %881 = vsyncpa [#allocation3], 1
    %s882 = scalar_lea.sflag [#allocation3], 1
    %883 = vsyncpa %s882, 1

</llo_original>
